<compile_context>
chip_gen: v7x
topology: tpu7x:2x2x1
jax: 0.10.0
libtpu: 0.0.40
codegen_flags: <defaults>
</compile_context>

<pallas_src>
import functools
import math

import jax
import jax.numpy as jnp
from jax.experimental import pallas as pl
from jax.experimental.pallas import tpu as pltpu


def _self_attention_kernel(h_ref, a_ref, b_ref, out_ref, *, graphs_per_step,
                           nodes_per_graph):
    """One grid step == `graphs_per_step` independent graphs.

    h_ref:   (G*N, dim) node features for G graphs, stacked along rows
    a_ref:   (dim, da)  shared projection (same block every step)
    b_ref:   (1, da)    shared scoring vector, lane-oriented row
    out_ref: (G, dim)   attention-pooled output rows for the G graphs
    """
    G, N = graphs_per_step, nodes_per_graph
    h2d = h_ref[...].astype(jnp.float32)                        # (G*N, dim)
    a = a_ref[...].astype(jnp.float32)                          # (dim, da)
    b_row = b_ref[...].astype(jnp.float32)                      # (1, da)
    dim = h2d.shape[1]

    # Single MXU matmul covering all G graphs of this step.
    ha = jnp.dot(h2d, a, preferred_element_type=jnp.float32)    # (G*N, da)

    # e = tanh(h @ a) @ b as VPU multiply + lane reduction (no (da,1) matmul).
    t = jnp.tanh(ha).reshape(G, N, -1)                          # (G, N, da)
    e = jnp.sum(t * b_row, axis=2, keepdims=True)               # (G, N, 1)

    # Numerically stable per-graph softmax over the N (sublane) axis.
    m = jnp.max(e, axis=1, keepdims=True)                       # (G, 1, 1)
    p = jnp.exp(e - m)                                          # (G, N, 1)
    denom = jnp.sum(p, axis=1, keepdims=True)                   # (G, 1, 1)

    # out_g = softmax(e_g) @ h_g as broadcast-mul + sublane reduction
    # (no transpose, no M==1 matmul).
    h3 = h2d.reshape(G, N, dim)                                 # (G, N, dim)
    weighted = jnp.sum(p * h3, axis=1)                          # (G, dim)

    # Exact division: it is a (G, 1) column, so exactness is essentially free
    # and keeps full f32 accuracy (the approx reciprocal was the error source).
    out_ref[...] = (weighted / denom.reshape(G, 1)).astype(out_ref.dtype)


def self_attention_forward_batched(h_b, a, b, *, graphs_per_step=8):
    """h_b: (B, N, dim), a: (dim, da), b: (da, 1) -> (B, dim)."""
    B, N, dim = h_b.shape
    da = a.shape[1]

    # Pool G graphs per grid step.  When the grid has more than one step, keep
    # G a multiple of 8 so the (G, dim) output block is sublane-dense for f32.
    if B <= graphs_per_step:
        G = B
    else:
        G = max(8, 8 * (graphs_per_step // 8))

    Bp = pl.cdiv(B, G) * G
    if Bp != B:
        # Pad with zero graphs (harmless: uniform attention over zeros -> 0);
        # the padded output rows are dropped below.
        h_b = jnp.pad(h_b, ((0, Bp - B), (0, 0), (0, 0)))
    # TODO(synk): if callers ever pad graphs to a common N, a length mask would
    # be needed inside the softmax; the module itself always passes dense N.

    h_flat = h_b.reshape(Bp * N, dim)      # one dense 2-D slab of node rows
    b_row = jnp.reshape(b, (1, da))        # scoring vector as a lane row

    kernel = functools.partial(_self_attention_kernel,
                               graphs_per_step=G, nodes_per_graph=N)
    out = pl.pallas_call(
        kernel,
        grid=(Bp // G,),
        out_shape=jax.ShapeDtypeStruct((Bp, dim), jnp.float32),
        in_specs=[
            # G graphs worth of node rows per step.
            pl.BlockSpec((G * N, dim), lambda i: (i, 0)),
            # Shared parameters: same (full) block every step.
            pl.BlockSpec((dim, da), lambda i: (0, 0)),
            pl.BlockSpec((1, da), lambda i: (0, 0)),
        ],
        out_specs=pl.BlockSpec((G, dim), lambda i: (i, 0)),
        compiler_params=pltpu.CompilerParams(
            dimension_semantics=("parallel",)),
    )(h_flat, a, b_row)
    return out[:B]


def self_attention_forward(h, a, b):
    """Single graph, identical semantics to SelfAttentionLayer.forward.

    h: (N, dim), a: (dim, da), b: (da, 1) -> (dim,)
    """
    return self_attention_forward_batched(h[None], a, b)[0]


def xavier_uniform(key, shape, gain):
    fan_in, fan_out = shape[0], shape[1]
    bound = gain * math.sqrt(6.0 / (fan_in + fan_out))
    return jax.random.uniform(key, shape, jnp.float32, minval=-bound, maxval=bound)


if __name__ == "__main__":
    # Small shapes consistent with the module: N nodes, dim hidden, da attn dim.
    N, dim, da = 8, 32, 16
    B = 16                       # B/G = 2 grid steps -> shards across v7x's 2 TCs
    key = jax.random.PRNGKey(0)
    k_h, k_hb, k_a, k_b = jax.random.split(key, 4)

    # Deterministic parameter init matching nn.init.xavier_uniform_(gain=1.414).
    a_param = xavier_uniform(k_a, (dim, da), gain=1.414)
    b_param = xavier_uniform(k_b, (da, 1), gain=1.414)

    def reference(h):
        e = (jnp.tanh(h @ a_param) @ b_param)[:, 0]
        attn = jax.nn.softmax(e)
        return attn @ h

    # Single-graph path (matches the PyTorch module's forward exactly).
    h = jax.random.normal(k_h, (N, dim), jnp.float32)
    out = self_attention_forward(h, a_param, b_param)
    jax.block_until_ready(out)
    assert out.shape == (dim,)
    # 1e-4 covers tiny transcendental / reduction-order differences between the
    # TPU vector units and XLA's reference implementation (exact division now).
    assert jnp.allclose(out, reference(h), atol=1e-4, rtol=1e-4)

    # Batched path: B graphs pooled 8-per-grid-step by one pallas_call.
    h_b = jax.random.normal(k_hb, (B, N, dim), jnp.float32)
    out_b = self_attention_forward_batched(h_b, a_param, b_param)
    jax.block_until_ready(out_b)
    assert out_b.shape == (B, dim)
    ref_b = jax.vmap(reference)(h_b)
    assert jnp.allclose(out_b, ref_b, atol=1e-4, rtol=1e-4)

    # Ragged batch (B not a multiple of G) exercises the zero-graph padding path.
    out_odd = self_attention_forward_batched(h_b[:11], a_param, b_param)
    jax.block_until_ready(out_odd)
    assert out_odd.shape == (11, dim)
    assert jnp.allclose(out_odd, ref_b[:11], atol=1e-4, rtol=1e-4)

    print("KERNEL_OK")
</pallas_src>

<mosaic_0001>
module attributes {stable_mosaic.version = 11 : i64} {
  func.func @_self_attention_kernel(%arg0: i32, %arg1: memref<8x32xf32, #tpu.memory_space<vmem>>, %arg2: memref<32x16xf32, #tpu.memory_space<vmem>>, %arg3: memref<1x16xf32, #tpu.memory_space<vmem>>, %arg4: memref<1x32xf32, #tpu.memory_space<vmem>>) attributes {dimension_semantics = [#tpu.dimension_semantics<parallel>], iteration_bounds = array<i64: 1>, scalar_prefetch = 0 : i64, scratch_operands = 0 : i64, tpu.core_type = #tpu.core_type<tc>, window_params = [{transform_indices = @transform_0, window_bounds = array<i64: 8, 32>}, {pipeline_mode = #tpu.pipeline_mode<synchronous>, transform_indices = @transform_1, window_bounds = array<i64: 32, 16>}, {pipeline_mode = #tpu.pipeline_mode<synchronous>, transform_indices = @transform_2, window_bounds = array<i64: 1, 16>}, {transform_indices = @transform_3, window_bounds = array<i64: 1, 32>}]} {
    %c0 = arith.constant 0 : index
    %c0_0 = arith.constant 0 : index
    %0 = vector.load %arg1[%c0, %c0_0] : memref<8x32xf32, #tpu.memory_space<vmem>>, vector<8x32xf32>
    %c0_1 = arith.constant 0 : index
    %c0_2 = arith.constant 0 : index
    %1 = vector.load %arg2[%c0_1, %c0_2] : memref<32x16xf32, #tpu.memory_space<vmem>>, vector<32x16xf32>
    %c0_3 = arith.constant 0 : index
    %c0_4 = arith.constant 0 : index
    %2 = vector.load %arg3[%c0_3, %c0_4] : memref<1x16xf32, #tpu.memory_space<vmem>>, vector<1x16xf32>
    %cst = arith.constant dense<0.000000e+00> : vector<8x16xf32>
    %3 = tpu.matmul %0, %1, %cst {dimension_numbers = #tpu.dot_dimension_numbers<[1], [0], [0], [1], [0, 0, 1, 1], [], []>} : vector<8x32xf32>, vector<32x16xf32>, vector<8x16xf32> -> vector<8x16xf32>
    %4 = math.tanh %3 : vector<8x16xf32>
    %5 = vector.shape_cast %4 : vector<8x16xf32> to vector<1x8x16xf32>
    %6 = vector.shape_cast %2 : vector<1x16xf32> to vector<1x1x16xf32>
    %7 = vector.broadcast %6 : vector<1x1x16xf32> to vector<1x8x16xf32>
    %8 = arith.mulf %5, %7 : vector<1x8x16xf32>
    %cst_5 = arith.constant dense<0.000000e+00> : vector<1x8xf32>
    %9 = vector.multi_reduction <add>, %8, %cst_5 [2] : vector<1x8x16xf32> to vector<1x8xf32>
    %10 = vector.shape_cast %9 : vector<1x8xf32> to vector<1x8x1xf32>
    %cst_6 = arith.constant dense<0xFF800000> : vector<1x1xf32>
    %11 = vector.multi_reduction <maximumf>, %10, %cst_6 [1] : vector<1x8x1xf32> to vector<1x1xf32>
    %12 = vector.shape_cast %11 : vector<1x1xf32> to vector<1x1x1xf32>
    %13 = vector.broadcast %12 : vector<1x1x1xf32> to vector<1x8x1xf32>
    %14 = arith.subf %10, %13 : vector<1x8x1xf32>
    %15 = math.exp %14 : vector<1x8x1xf32>
    %cst_7 = arith.constant dense<0.000000e+00> : vector<1x1xf32>
    %16 = vector.multi_reduction <add>, %15, %cst_7 [1] : vector<1x8x1xf32> to vector<1x1xf32>
    %17 = vector.shape_cast %16 : vector<1x1xf32> to vector<1x1x1xf32>
    %18 = vector.shape_cast %0 : vector<8x32xf32> to vector<1x8x32xf32>
    %19 = vector.broadcast %15 : vector<1x8x1xf32> to vector<1x8x32xf32>
    %20 = arith.mulf %19, %18 : vector<1x8x32xf32>
    %cst_8 = arith.constant dense<0.000000e+00> : vector<1x32xf32>
    %21 = vector.multi_reduction <add>, %20, %cst_8 [1] : vector<1x8x32xf32> to vector<1x32xf32>
    %22 = vector.shape_cast %17 : vector<1x1x1xf32> to vector<1x1xf32>
    %23 = vector.broadcast %22 : vector<1x1xf32> to vector<1x32xf32>
    %24 = arith.divf %21, %23 : vector<1x32xf32>
    %c0_9 = arith.constant 0 : index
    %c0_10 = arith.constant 0 : index
    %25 = vector.load %arg4[%c0_9, %c0_10] : memref<1x32xf32, #tpu.memory_space<vmem>>, vector<1x32xf32>
    tpu.vector_store %arg4[%c0_9, %c0_10], %24 {strides = array<i32>} : memref<1x32xf32, #tpu.memory_space<vmem>>, vector<1x32xf32>,
    return
  }
  func.func @transform_0(%arg0: i32) -> (i32, i32) {
    %c0_i32 = arith.constant 0 : i32
    %c0_i32_0 = arith.constant 0 : i32
    return %arg0, %c0_i32 : i32, i32
  }
  func.func @transform_1(%arg0: i32) -> (i32, i32) {
    %c0_i32 = arith.constant 0 : i32
    %c0_i32_0 = arith.constant 0 : i32
    %c0_i32_1 = arith.constant 0 : i32
    return %c0_i32, %c0_i32_0 : i32, i32
  }
  func.func @transform_2(%arg0: i32) -> (i32, i32) {
    %c0_i32 = arith.constant 0 : i32
    %c0_i32_0 = arith.constant 0 : i32
    %c0_i32_1 = arith.constant 0 : i32
    return %c0_i32, %c0_i32_0 : i32, i32
  }
  func.func @transform_3(%arg0: i32) -> (i32, i32) {
    %c0_i32 = arith.constant 0 : i32
    %c0_i32_0 = arith.constant 0 : i32
    return %arg0, %c0_i32 : i32, i32
  }
}

</mosaic_0001>

<llo_original>
// kernel: tpu_custom_call.1
$region0: #{tpu_custom_call.1}
  #allocation0 [shape = 'u32[]', space=smem, size = 0x4, offset = 0x4, fixed_abs, tag = 'smem constant byte address 0x4 - core index']
  #allocation1 [shape = 'u32[144,128]{1,0:T(1,128)}', space=vmem, size = 0x12000, scoped, tag = 'internal scratch']
  %s0 = inlined_call_operand.vmem [shape: f32[8,32], index: 0, kind: input, shape index: {}]
  %s1 = inlined_call_operand.vmem [shape: f32[32,16], index: 1, kind: input, shape index: {}]
  %s2 = inlined_call_operand.vmem [shape: f32[1,16], index: 2, kind: input, shape index: {}]
  %s3 = inlined_call_operand.hbm [shape: f32[1,32], index: 3, kind: output, shape index: {}]
  %s4 = sld [smem:[#allocation0]]
  $region22: #{tpu_custom_call.1} parent=0
    _
  %s6 = ssub.s32 1, %s4
  %s7 = scalar_select 0, %s6, %s4
  $region1: #{tpu_custom_call.1} parent=0
    #allocation2 [shape = 'u8[512]{0}', space=vmem, size = 0x400, scoped, tag = 'output window, operand 0, single buffered']
    #allocation3 [shape = 's32[1]{0}', space=sflag, size = 0x4, scoped, tag = 'scoped memory for tpu_custom_call.1']
    %8 = vsyncpa [#allocation3], 0
    // Predicated region
    $region2: #{tpu_custom_call.1} parent=1 // pred_check
      _
    $region3: #{tpu_custom_call.1} parent=1 // pred_check_branch
      %10 = sbr.rel (0) target = $region5
    $region4: #{tpu_custom_call.1} parent=1 // pred_region
      _
    $region5: #{tpu_custom_call.1} parent=1 // pred_fallthru
      _
    // Predicated region
    $region6: #{tpu_custom_call.1} parent=1 // pred_check
      _
    $region7: #{tpu_custom_call.1} parent=1 // pred_check_branch
      %12 = sbr.rel (0) target = $region9
    $region8: #{tpu_custom_call.1} parent=1 // pred_region
      _
    $region9: #{tpu_custom_call.1} parent=1 // pred_fallthru
      _
    // Predicated region
    $region10: #{tpu_custom_call.1} parent=1 // pred_check
      _
    $region11: #{tpu_custom_call.1} parent=1 // pred_check_branch
      %14 = sbr.rel (0) target = $region13
    $region12: #{tpu_custom_call.1} parent=1 // pred_region
      _
    $region13: #{tpu_custom_call.1} parent=1 // pred_fallthru
      _
    %v15 = vld [vmem:[%s0] sm:$0xff]
    %v16 = vld [vmem:[%s1] sm:$0xff]
    %v17 = vld [vmem:[%s1 + $0x8] sm:$0xff]
    %v18 = vld [vmem:[%s1 + $0x10] sm:$0xff]
    %v19 = vld [vmem:[%s1 + $0x18] sm:$0xff]
    %v20 = vld [vmem:[%s2] sm:$0x1]
    %vm21 = vcmask 261120
    %v23 = vsel %vm21, %v15, 0
    %25 = vmatprep.subr.mxu0 0.0
    %26 = vmatpush1.msra.mxu0 %v16
    %27 = vmatprep.subr.mxu0 0.0
    %28 = vmatpush1.msra.mxu0 %v17
    %29 = vmatprep.subr.mxu0 0.0
    %30 = vmatpush1.msra.mxu0 %v18
    %31 = vmatprep.subr.mxu0 0.0
    %32 = vmatpush1.msra.mxu0 %v19
    %33 = vmatprep.subr.mxu0 0.0
    %34 = vmatpush1.msra.mxu0 0.0
    %35 = vmatprep.subr.mxu0 0.0
    %36 = vmatpush1.msra.mxu0 0.0
    %37 = vmatprep.subr.mxu0 0.0
    %38 = vmatpush1.msra.mxu0 0.0
    %39 = vmatprep.subr.mxu0 0.0
    %40 = vmatpush1.msra.mxu0 0.0
    %41 = vmatprep.subr.mxu0 0.0
    %42 = vmatpush1.msra.mxu0 0.0
    %43 = vmatprep.subr.mxu0 0.0
    %44 = vmatpush1.msra.mxu0 0.0
    %45 = vmatprep.subr.mxu0 0.0
    %46 = vmatpush1.msra.mxu0 0.0
    %47 = vmatprep.subr.mxu0 0.0
    %48 = vmatpush1.msra.mxu0 0.0
    %49 = vmatprep.subr.mxu0 0.0
    %50 = vmatpush1.msra.mxu0 0.0
    %51 = vmatprep.subr.mxu0 0.0
    %52 = vmatpush1.msra.mxu0 0.0
    %53 = vmatprep.subr.mxu0 0.0
    %54 = vmatpush1.msra.mxu0 0.0
    %55 = vmatprep.subr.mxu0 0.0
    %56 = vmatpush1.msra.mxu0 0.0
    %57 = vmatprep.subr.mxu0 0.0
    %58 = vmatpush1.msra.mxu0 0.0
    %59 = vmatprep.subr.mxu0 0.0
    %60 = vmatpush1.msra.mxu0 0.0
    %61 = vmatprep.subr.mxu0 0.0
    %62 = vmatpush1.msra.mxu0 0.0
    %63 = vmatprep.subr.mxu0 0.0
    %64 = vmatpush1.msra.mxu0 0.0
    %65 = vmatprep.subr.mxu0 0.0
    %66 = vmatpush1.msra.mxu0 0.0
    %67 = vmatprep.subr.mxu0 0.0
    %68 = vmatpush1.msra.mxu0 0.0
    %69 = vmatprep.subr.mxu0 0.0
    %70 = vmatpush1.msra.mxu0 0.0
    %71 = vmatprep.subr.mxu0 0.0
    %72 = vmatpush1.msra.mxu0 0.0
    %73 = vmatprep.subr.mxu0 0.0
    %74 = vmatpush1.msra.mxu0 0.0
    %75 = vmatprep.subr.mxu0 0.0
    %76 = vmatpush1.msra.mxu0 0.0
    %77 = vmatprep.subr.mxu0 0.0
    %78 = vmatpush1.msra.mxu0 0.0
    %79 = vmatprep.subr.mxu0 0.0
    %80 = vmatpush1.msra.mxu0 0.0
    %81 = vmatprep.subr.mxu0 0.0
    %82 = vmatpush1.msra.mxu0 0.0
    %83 = vmatprep.subr.mxu0 0.0
    %84 = vmatpush1.msra.mxu0 0.0
    %85 = vmatprep.subr.mxu0 0.0
    %86 = vmatpush1.msra.mxu0 0.0
    %87 = vmatprep.subr.mxu0 0.0
    %88 = vmatpush1.msra.mxu0 0.0
    %89 = vmatprep.mubr.f32.mxu0 0.0
    %90 = vmatmul.mubr.f32.gmra.mrb[0].mxu0 %v23
    %v91 = vpop.f32.mrb[0].mxu0
    %v92 = vadd.f32 0.0, %v91
    %v93 = vpop.f32.mrb[0].mxu0
    %94 = vdwg.mxu0
    %v95 = vtanh.pop %v92
    %v97 = vlaneseq
    %v98 = vshrl.u32 %v97, 7
    %v99 = vsub.s32 0, %v98
    %v100 = vrot.slane %v20, %v99
    %v102 = vmul.f32 %v95, %v100
    %vm103 = vcmask 130048
    %v104 = vsel %vm103, %v102, 0.0
    %105 = vadd.xlane.f32.xlu0 %v104
    %v106 = vpop.xlane.xlu0 %105
    %v107 = vrot.slane %v106, 4
    %v108 = vmax.f32 %v106, %v107
    %v109 = vrot.slane %v108, 2
    %v110 = vmax.f32 %v108, %v109
    %v111 = vrot.slane %v110, 1
    %v112 = vmax.f32 %v110, %v111
    %v113 = vsub.f32 %v106, %v112
    %v114 = vmul.f32 %v113, 1.442695
    %v115 = vpow.pop %v114
    %v116 = vrot.slane %v115, 4
    %v117 = vadd.f32 %v115, %v116
    %v118 = vrot.slane %v117, 2
    %v119 = vadd.f32 %v117, %v118
    %v120 = vrot.slane %v119, 1
    %v121 = vadd.f32 %v119, %v120
    %v122 = vmul.f32 %v115, %v15
    %v123 = vsel %vm21, %v122, 0.0
    %v124 = vrot.slane %v123, 4
    %v125 = vadd.f32 %v123, %v124
    %v126 = vrot.slane %v125, 2
    %v127 = vadd.f32 %v125, %v126
    %v128 = vrot.slane %v127, 1
    %v129 = vadd.f32 %v127, %v128
    %v130 = vrcp.pop %v121
    %v131 = vmul.f32 %v129, %v130
    %vm132 = vcmask 253952
    %133 = vst.msk [vmem:[#allocation2] sm:$0x1] %vm132, %v131
    // Predicated region
    $region14: #{tpu_custom_call.1} parent=1 // pred_check
      _
    $region15: #{tpu_custom_call.1} parent=1 // pred_check_branch
      %135 = sbr.rel (0) target = $region17
    $region16: #{tpu_custom_call.1} parent=1 // pred_region
      %s137 = ssub.s32 16, 16
      %138 = vsyncadd [#allocation3], %s137
      %s140 = sshll.u32 [#allocation2], 4
      %s141 = int_to_ptr.vmem [resolvable:$true] %s140
      %143 = dma.vmem_to_hbm [thread:$0]  %s141, 16, %s3, [#allocation3]
    $region17: #{tpu_custom_call.1} parent=1 // pred_fallthru
      _
    // Predicated region
    $region18: #{tpu_custom_call.1} parent=1 // pred_check
      _
    $region19: #{tpu_custom_call.1} parent=1 // pred_check_branch
      %145 = sbr.rel (0) target = $region21
    $region20: #{tpu_custom_call.1} parent=1 // pred_region
      %146 = dma.done [#allocation3], 16
    $region21: #{tpu_custom_call.1} parent=1 // pred_fallthru
      _
    %147 = vsyncpa [#allocation3], 1

</llo_original>
